<compile_context>
chip_gen: v7x
topology: tpu7x:2x2x1
jax: 0.10.0
libtpu: 0.0.40
codegen_flags: <defaults>
</compile_context>

<pallas_src>
import functools

import jax
import jax.numpy as jnp
from jax.experimental import pallas as pl
from jax.experimental.pallas import tpu as pltpu

ALPHA = 0.3

_LANE = 1024          # lane-dense last dim for the tiled content MSE
_MAX_TILE_ROWS = 256  # (256, 1024) f32 tile = 1 MiB per input per buffer


# ---------------------------------------------------------------------------
# Fused kernel: content MSE (tiled over the grid) + all style levels (step 0).
# ---------------------------------------------------------------------------
def _fused_loss_kernel(*refs, num_levels, spatials, inv_e, alpha):
    a_ref = refs[0]                       # content tile (tile_rows, LANE)
    b_ref = refs[1]
    level_refs = refs[2:2 + 2 * num_levels]
    o_ref = refs[2 + 2 * num_levels]      # (1, 1) SMEM output
    acc_ref = refs[3 + 2 * num_levels]    # (tile_rows, LANE) VMEM accumulator
    style_ref = refs[4 + 2 * num_levels]  # (1,) SMEM style accumulator

    step = pl.program_id(0)
    last = pl.num_programs(0) - 1

    @pl.when(step == 0)
    def _init():
        # Zero the lane-dense content accumulator.
        acc_ref[...] = jnp.zeros_like(acc_ref)

        # Style losses: per-row (instance) mean/std over spatial, one-pass
        # sum / sum-of-squares so no centered copies are materialized.
        style = jnp.float32(0.0)
        for lvl in range(num_levels):
            of = level_refs[2 * lvl][...].astype(jnp.float32)      # (N*C, HW)
            sf = level_refs[2 * lvl + 1][...].astype(jnp.float32)

            s = spatials[lvl]
            inv_s = 1.0 / float(s)
            # Guard against HW == 1 (torch.std would be NaN; we return 0).
            inv_sm1 = 1.0 / float(s - 1) if s > 1 else 0.0
            inv_rows = 1.0 / float(of.shape[0])

            o_sum = jnp.sum(of, axis=1, keepdims=True)
            o_sq = jnp.sum(of * of, axis=1, keepdims=True)
            s_sum = jnp.sum(sf, axis=1, keepdims=True)
            s_sq = jnp.sum(sf * sf, axis=1, keepdims=True)

            o_mean = o_sum * inv_s
            s_mean = s_sum * inv_s
            # var = (sumsq - sum^2/S)/(S-1), clamped at 0 before sqrt.
            o_std = jnp.sqrt(jnp.maximum(o_sq - o_sum * o_mean, 0.0) * inv_sm1)
            s_std = jnp.sqrt(jnp.maximum(s_sq - s_sum * s_mean, 0.0) * inv_sm1)

            dm = o_mean - s_mean
            ds = o_std - s_std
            style = style + (jnp.sum(dm * dm) + jnp.sum(ds * ds)) * inv_rows
        style_ref[0] = style

    # Content MSE partial: element-wise accumulate on the VPU (no per-tile
    # cross-lane reduction).
    d = a_ref[...].astype(jnp.float32) - b_ref[...].astype(jnp.float32)
    acc_ref[...] += d * d

    @pl.when(step == last)
    def _finalize():
        content = jnp.sum(acc_ref[...]) * inv_e   # single cross-lane reduce
        o_ref[0, 0] = content + alpha * style_ref[0]


def _pack_pair(a, b, lane=_LANE, max_tile_rows=_MAX_TILE_ROWS):
    """Flatten, zero-pad and reshape a tensor pair to (rows, lane).

    Zero padding is safe for MSE: padded diffs are exactly 0."""
    assert a.shape == b.shape
    e = int(a.size)
    rows = -(-e // lane)                    # ceil
    rows = -(-rows // 8) * 8                # multiple of 8 sublanes
    tile_rows = min(max_tile_rows, rows)
    rows = -(-rows // tile_rows) * tile_rows  # rows divisible by tile_rows
    padded = rows * lane

    af = a.reshape(-1)
    bf = b.reshape(-1)
    if padded != e:
        af = jnp.pad(af, (0, padded - e))
        bf = jnp.pad(bf, (0, padded - e))
    return af.reshape(rows, lane), bf.reshape(rows, lane), tile_rows


# ---------------------------------------------------------------------------
# Full UAdaINLoss forward (single fused pallas_call).
# ---------------------------------------------------------------------------
def uadain_loss(out_map, transformed_map, out_encoded, style_encoded,
                alpha=ALPHA):
    a2, b2, tile_rows = _pack_pair(out_map, transformed_map)
    rows, lane = a2.shape
    grid = (rows // tile_rows,)
    inv_e = 1.0 / float(out_map.size)

    # TODO(synk): very large encoder levels are kept fully VMEM-resident;
    # tile their (N*C) rows like the content pair if a level exceeds ~8 MiB.
    level_inputs = []
    level_specs = []
    spatials = []
    for of, sf in zip(out_encoded, style_encoded):
        n, c, h, w = of.shape
        level_inputs += [of.reshape(n * c, h * w), sf.reshape(n * c, h * w)]
        spec = pl.BlockSpec((n * c, h * w), lambda i: (0, 0))
        level_specs += [spec, spec]
        spatials.append(h * w)

    kernel = functools.partial(
        _fused_loss_kernel,
        num_levels=len(spatials),
        spatials=tuple(spatials),
        inv_e=inv_e,
        alpha=float(alpha),
    )

    out = pl.pallas_call(
        kernel,
        out_shape=jax.ShapeDtypeStruct((1, 1), jnp.float32),
        grid=grid,
        in_specs=[
            pl.BlockSpec((tile_rows, lane), lambda i: (i, 0)),
            pl.BlockSpec((tile_rows, lane), lambda i: (i, 0)),
        ] + level_specs,
        out_specs=pl.BlockSpec((1, 1), lambda i: (0, 0),
                               memory_space=pltpu.SMEM),
        scratch_shapes=[
            pltpu.VMEM((tile_rows, lane), jnp.float32),  # content partial acc
            pltpu.SMEM((1,), jnp.float32),               # style loss acc
        ],
        compiler_params=pltpu.CompilerParams(
            dimension_semantics=("arbitrary",),
            vmem_limit_bytes=32 * 1024 * 1024,
        ),
    )(a2, b2, *level_inputs)
    return out[0, 0]


# Pure-JAX reference for sanity checking (mirrors the PyTorch semantics).
def _reference_loss(out_map, transformed_map, out_encoded, style_encoded,
                    alpha=ALPHA):
    def mse(a, b):
        return jnp.mean((a.astype(jnp.float32) - b.astype(jnp.float32)) ** 2)

    content = mse(out_map, transformed_map)
    style = jnp.float32(0.0)
    for of, sf in zip(out_encoded, style_encoded):
        om = jnp.mean(of, axis=(2, 3))
        sm = jnp.mean(sf, axis=(2, 3))
        ostd = jnp.std(of, axis=(2, 3), ddof=1)
        sstd = jnp.std(sf, axis=(2, 3), ddof=1)
        style = style + mse(om, sm) + mse(ostd, sstd)
    return content + alpha * style


if __name__ == "__main__":
    key = jax.random.PRNGKey(0)
    k = jax.random.split(key, 6)

    # out_map / transformed_map: (N, C, H, W)
    out_map = jax.random.normal(k[0], (2, 4, 16, 16), dtype=jnp.float32)
    transformed_map = jax.random.normal(k[1], (2, 4, 16, 16),
                                        dtype=jnp.float32)

    # Two encoder feature levels (as produced by a VGG-like encoder).
    out_encoded = [
        jax.random.normal(k[2], (2, 8, 16, 16), dtype=jnp.float32),
        jax.random.normal(k[3], (2, 16, 8, 8), dtype=jnp.float32),
    ]
    style_encoded = [
        jax.random.normal(k[4], (2, 8, 16, 16), dtype=jnp.float32),
        jax.random.normal(k[5], (2, 16, 8, 8), dtype=jnp.float32),
    ]

    loss = uadain_loss(out_map, transformed_map, out_encoded, style_encoded)
    loss = jax.block_until_ready(loss)

    ref = _reference_loss(out_map, transformed_map, out_encoded,
                          style_encoded)
    assert jnp.allclose(loss, ref, rtol=1e-4, atol=1e-5), (loss, ref)

    print("KERNEL_OK")
</pallas_src>

<mosaic_0001>
module attributes {stable_mosaic.version = 11 : i64} {
  func.func @_fused_loss_kernel(%arg0: i32, %arg1: memref<8x1024xf32, #tpu.memory_space<vmem>>, %arg2: memref<8x1024xf32, #tpu.memory_space<vmem>>, %arg3: memref<16x256xf32, #tpu.memory_space<vmem>>, %arg4: memref<16x256xf32, #tpu.memory_space<vmem>>, %arg5: memref<32x64xf32, #tpu.memory_space<vmem>>, %arg6: memref<32x64xf32, #tpu.memory_space<vmem>>, %arg7: memref<1x1xf32, #tpu.memory_space<smem>>, %arg8: memref<8x1024xf32, #tpu.memory_space<vmem>>, %arg9: memref<1xf32, #tpu.memory_space<smem>>) attributes {dimension_semantics = [#tpu.dimension_semantics<arbitrary>], iteration_bounds = array<i64: 1>, scalar_prefetch = 0 : i64, scratch_operands = 2 : i64, tpu.core_type = #tpu.core_type<tc>, window_params = [{transform_indices = @transform_0, window_bounds = array<i64: 8, 1024>}, {transform_indices = @transform_1, window_bounds = array<i64: 8, 1024>}, {pipeline_mode = #tpu.pipeline_mode<synchronous>, transform_indices = @transform_2, window_bounds = array<i64: 16, 256>}, {pipeline_mode = #tpu.pipeline_mode<synchronous>, transform_indices = @transform_3, window_bounds = array<i64: 16, 256>}, {pipeline_mode = #tpu.pipeline_mode<synchronous>, transform_indices = @transform_4, window_bounds = array<i64: 32, 64>}, {pipeline_mode = #tpu.pipeline_mode<synchronous>, transform_indices = @transform_5, window_bounds = array<i64: 32, 64>}, {transform_indices = @transform_6, window_bounds = array<i64: 1, 1>}]} {
    %c0_i32 = arith.constant 0 : i32
    %0 = arith.cmpi eq, %arg0, %c0_i32 : i32
    %1 = arith.extui %0 : i1 to i32
    %c0_i32_0 = arith.constant 0 : i32
    %2 = arith.cmpi ne, %1, %c0_i32_0 : i32
    scf.if %2 {
      %cst = arith.constant 0.000000e+00 : f32
      %13 = vector.broadcast %cst : f32 to vector<8x1024xf32>
      %c0_10 = arith.constant 0 : index
      %c0_11 = arith.constant 0 : index
      %14 = vector.load %arg8[%c0_10, %c0_11] : memref<8x1024xf32, #tpu.memory_space<vmem>>, vector<8x1024xf32>
      tpu.vector_store %arg8[%c0_10, %c0_11], %13 {strides = array<i32>} : memref<8x1024xf32, #tpu.memory_space<vmem>>, vector<8x1024xf32>,
      %c0_12 = arith.constant 0 : index
      %c0_13 = arith.constant 0 : index
      %15 = vector.load %arg3[%c0_12, %c0_13] : memref<16x256xf32, #tpu.memory_space<vmem>>, vector<16x256xf32>
      %c0_14 = arith.constant 0 : index
      %c0_15 = arith.constant 0 : index
      %16 = vector.load %arg4[%c0_14, %c0_15] : memref<16x256xf32, #tpu.memory_space<vmem>>, vector<16x256xf32>
      %cst_16 = arith.constant dense<0.000000e+00> : vector<16xf32>
      %17 = vector.multi_reduction <add>, %15, %cst_16 [1] : vector<16x256xf32> to vector<16xf32>
      %18 = vector.shape_cast %17 : vector<16xf32> to vector<16x1xf32>
      %19 = arith.mulf %15, %15 : vector<16x256xf32>
      %cst_17 = arith.constant dense<0.000000e+00> : vector<16xf32>
      %20 = vector.multi_reduction <add>, %19, %cst_17 [1] : vector<16x256xf32> to vector<16xf32>
      %21 = vector.shape_cast %20 : vector<16xf32> to vector<16x1xf32>
      %cst_18 = arith.constant dense<0.000000e+00> : vector<16xf32>
      %22 = vector.multi_reduction <add>, %16, %cst_18 [1] : vector<16x256xf32> to vector<16xf32>
      %23 = vector.shape_cast %22 : vector<16xf32> to vector<16x1xf32>
      %24 = arith.mulf %16, %16 : vector<16x256xf32>
      %cst_19 = arith.constant dense<0.000000e+00> : vector<16xf32>
      %25 = vector.multi_reduction <add>, %24, %cst_19 [1] : vector<16x256xf32> to vector<16xf32>
      %26 = vector.shape_cast %25 : vector<16xf32> to vector<16x1xf32>
      %cst_20 = arith.constant 3.906250e-03 : f32
      %27 = vector.broadcast %cst_20 : f32 to vector<16x1xf32>
      %28 = arith.mulf %18, %27 : vector<16x1xf32>
      %cst_21 = arith.constant 3.906250e-03 : f32
      %29 = vector.broadcast %cst_21 : f32 to vector<16x1xf32>
      %30 = arith.mulf %23, %29 : vector<16x1xf32>
      %31 = arith.mulf %18, %28 : vector<16x1xf32>
      %32 = arith.subf %21, %31 : vector<16x1xf32>
      %cst_22 = arith.constant 0.000000e+00 : f32
      %33 = vector.broadcast %cst_22 : f32 to vector<16x1xf32>
      %34 = arith.maximumf %32, %33 : vector<16x1xf32>
      %cst_23 = arith.constant 0.00392156886 : f32
      %35 = vector.broadcast %cst_23 : f32 to vector<16x1xf32>
      %36 = arith.mulf %34, %35 : vector<16x1xf32>
      %37 = math.sqrt %36 : vector<16x1xf32>
      %38 = arith.mulf %23, %30 : vector<16x1xf32>
      %39 = arith.subf %26, %38 : vector<16x1xf32>
      %cst_24 = arith.constant 0.000000e+00 : f32
      %40 = vector.broadcast %cst_24 : f32 to vector<16x1xf32>
      %41 = arith.maximumf %39, %40 : vector<16x1xf32>
      %cst_25 = arith.constant 0.00392156886 : f32
      %42 = vector.broadcast %cst_25 : f32 to vector<16x1xf32>
      %43 = arith.mulf %41, %42 : vector<16x1xf32>
      %44 = math.sqrt %43 : vector<16x1xf32>
      %45 = arith.subf %28, %30 : vector<16x1xf32>
      %46 = arith.subf %37, %44 : vector<16x1xf32>
      %47 = arith.mulf %45, %45 : vector<16x1xf32>
      %48 = vector.shape_cast %47 : vector<16x1xf32> to vector<1x16x1xf32>
      %cst_26 = arith.constant dense<0.000000e+00> : vector<1xf32>
      %49 = vector.multi_reduction <add>, %48, %cst_26 [1, 2] : vector<1x16x1xf32> to vector<1xf32>
      %50 = vector.shape_cast %49 : vector<1xf32> to vector<1x1x1xf32>
      %51 = vector.extract %50[0, 0, 0] : f32 from vector<1x1x1xf32>
      %52 = arith.mulf %46, %46 : vector<16x1xf32>
      %53 = vector.shape_cast %52 : vector<16x1xf32> to vector<1x16x1xf32>
      %cst_27 = arith.constant dense<0.000000e+00> : vector<1xf32>
      %54 = vector.multi_reduction <add>, %53, %cst_27 [1, 2] : vector<1x16x1xf32> to vector<1xf32>
      %55 = vector.shape_cast %54 : vector<1xf32> to vector<1x1x1xf32>
      %56 = vector.extract %55[0, 0, 0] : f32 from vector<1x1x1xf32>
      %57 = arith.addf %51, %56 : f32
      %cst_28 = arith.constant 6.250000e-02 : f32
      %58 = arith.mulf %57, %cst_28 : f32
      %cst_29 = arith.constant 0.000000e+00 : f32
      %59 = arith.addf %cst_29, %58 : f32
      %c0_30 = arith.constant 0 : index
      %c0_31 = arith.constant 0 : index
      %60 = vector.load %arg5[%c0_30, %c0_31] : memref<32x64xf32, #tpu.memory_space<vmem>>, vector<32x64xf32>
      %c0_32 = arith.constant 0 : index
      %c0_33 = arith.constant 0 : index
      %61 = vector.load %arg6[%c0_32, %c0_33] : memref<32x64xf32, #tpu.memory_space<vmem>>, vector<32x64xf32>
      %cst_34 = arith.constant dense<0.000000e+00> : vector<32xf32>
      %62 = vector.multi_reduction <add>, %60, %cst_34 [1] : vector<32x64xf32> to vector<32xf32>
      %63 = vector.shape_cast %62 : vector<32xf32> to vector<32x1xf32>
      %64 = arith.mulf %60, %60 : vector<32x64xf32>
      %cst_35 = arith.constant dense<0.000000e+00> : vector<32xf32>
      %65 = vector.multi_reduction <add>, %64, %cst_35 [1] : vector<32x64xf32> to vector<32xf32>
      %66 = vector.shape_cast %65 : vector<32xf32> to vector<32x1xf32>
      %cst_36 = arith.constant dense<0.000000e+00> : vector<32xf32>
      %67 = vector.multi_reduction <add>, %61, %cst_36 [1] : vector<32x64xf32> to vector<32xf32>
      %68 = vector.shape_cast %67 : vector<32xf32> to vector<32x1xf32>
      %69 = arith.mulf %61, %61 : vector<32x64xf32>
      %cst_37 = arith.constant dense<0.000000e+00> : vector<32xf32>
      %70 = vector.multi_reduction <add>, %69, %cst_37 [1] : vector<32x64xf32> to vector<32xf32>
      %71 = vector.shape_cast %70 : vector<32xf32> to vector<32x1xf32>
      %cst_38 = arith.constant 1.562500e-02 : f32
      %72 = vector.broadcast %cst_38 : f32 to vector<32x1xf32>
      %73 = arith.mulf %63, %72 : vector<32x1xf32>
      %cst_39 = arith.constant 1.562500e-02 : f32
      %74 = vector.broadcast %cst_39 : f32 to vector<32x1xf32>
      %75 = arith.mulf %68, %74 : vector<32x1xf32>
      %76 = arith.mulf %63, %73 : vector<32x1xf32>
      %77 = arith.subf %66, %76 : vector<32x1xf32>
      %cst_40 = arith.constant 0.000000e+00 : f32
      %78 = vector.broadcast %cst_40 : f32 to vector<32x1xf32>
      %79 = arith.maximumf %77, %78 : vector<32x1xf32>
      %cst_41 = arith.constant 0.0158730168 : f32
      %80 = vector.broadcast %cst_41 : f32 to vector<32x1xf32>
      %81 = arith.mulf %79, %80 : vector<32x1xf32>
      %82 = math.sqrt %81 : vector<32x1xf32>
      %83 = arith.mulf %68, %75 : vector<32x1xf32>
      %84 = arith.subf %71, %83 : vector<32x1xf32>
      %cst_42 = arith.constant 0.000000e+00 : f32
      %85 = vector.broadcast %cst_42 : f32 to vector<32x1xf32>
      %86 = arith.maximumf %84, %85 : vector<32x1xf32>
      %cst_43 = arith.constant 0.0158730168 : f32
      %87 = vector.broadcast %cst_43 : f32 to vector<32x1xf32>
      %88 = arith.mulf %86, %87 : vector<32x1xf32>
      %89 = math.sqrt %88 : vector<32x1xf32>
      %90 = arith.subf %73, %75 : vector<32x1xf32>
      %91 = arith.subf %82, %89 : vector<32x1xf32>
      %92 = arith.mulf %90, %90 : vector<32x1xf32>
      %93 = vector.shape_cast %92 : vector<32x1xf32> to vector<1x32x1xf32>
      %cst_44 = arith.constant dense<0.000000e+00> : vector<1xf32>
      %94 = vector.multi_reduction <add>, %93, %cst_44 [1, 2] : vector<1x32x1xf32> to vector<1xf32>
      %95 = vector.shape_cast %94 : vector<1xf32> to vector<1x1x1xf32>
      %96 = vector.extract %95[0, 0, 0] : f32 from vector<1x1x1xf32>
      %97 = arith.mulf %91, %91 : vector<32x1xf32>
      %98 = vector.shape_cast %97 : vector<32x1xf32> to vector<1x32x1xf32>
      %cst_45 = arith.constant dense<0.000000e+00> : vector<1xf32>
      %99 = vector.multi_reduction <add>, %98, %cst_45 [1, 2] : vector<1x32x1xf32> to vector<1xf32>
      %100 = vector.shape_cast %99 : vector<1xf32> to vector<1x1x1xf32>
      %101 = vector.extract %100[0, 0, 0] : f32 from vector<1x1x1xf32>
      %102 = arith.addf %96, %101 : f32
      %cst_46 = arith.constant 3.125000e-02 : f32
      %103 = arith.mulf %102, %cst_46 : f32
      %104 = arith.addf %59, %103 : f32
      %c0_47 = arith.constant 0 : index
      %105 = memref.load %arg9[%c0_47] : memref<1xf32, #tpu.memory_space<smem>>
      memref.store %104, %arg9[%c0_47] : memref<1xf32, #tpu.memory_space<smem>>
    } else {
    }
    %c0 = arith.constant 0 : index
    %c0_1 = arith.constant 0 : index
    %3 = vector.load %arg1[%c0, %c0_1] : memref<8x1024xf32, #tpu.memory_space<vmem>>, vector<8x1024xf32>
    %c0_2 = arith.constant 0 : index
    %c0_3 = arith.constant 0 : index
    %4 = vector.load %arg2[%c0_2, %c0_3] : memref<8x1024xf32, #tpu.memory_space<vmem>>, vector<8x1024xf32>
    %5 = arith.subf %3, %4 : vector<8x1024xf32>
    %c0_4 = arith.constant 0 : index
    %c0_5 = arith.constant 0 : index
    %6 = vector.load %arg8[%c0_4, %c0_5] : memref<8x1024xf32, #tpu.memory_space<vmem>>, vector<8x1024xf32>
    %7 = arith.mulf %5, %5 : vector<8x1024xf32>
    %8 = arith.addf %6, %7 : vector<8x1024xf32>
    %c0_6 = arith.constant 0 : index
    %c0_7 = arith.constant 0 : index
    %9 = vector.load %arg8[%c0_6, %c0_7] : memref<8x1024xf32, #tpu.memory_space<vmem>>, vector<8x1024xf32>
    tpu.vector_store %arg8[%c0_6, %c0_7], %8 {strides = array<i32>} : memref<8x1024xf32, #tpu.memory_space<vmem>>, vector<8x1024xf32>,
    %c0_i32_8 = arith.constant 0 : i32
    %10 = arith.cmpi eq, %arg0, %c0_i32_8 : i32
    %11 = arith.extui %10 : i1 to i32
    %c0_i32_9 = arith.constant 0 : i32
    %12 = arith.cmpi ne, %11, %c0_i32_9 : i32
    scf.if %12 {
      %c0_10 = arith.constant 0 : index
      %c0_11 = arith.constant 0 : index
      %13 = vector.load %arg8[%c0_10, %c0_11] : memref<8x1024xf32, #tpu.memory_space<vmem>>, vector<8x1024xf32>
      %14 = vector.shape_cast %13 : vector<8x1024xf32> to vector<1x8x1024xf32>
      %cst = arith.constant dense<0.000000e+00> : vector<1xf32>
      %15 = vector.multi_reduction <add>, %14, %cst [1, 2] : vector<1x8x1024xf32> to vector<1xf32>
      %16 = vector.shape_cast %15 : vector<1xf32> to vector<1x1x1xf32>
      %17 = vector.extract %16[0, 0, 0] : f32 from vector<1x1x1xf32>
      %cst_12 = arith.constant 4.8828125E-4 : f32
      %18 = arith.mulf %17, %cst_12 : f32
      %c0_13 = arith.constant 0 : index
      %19 = memref.load %arg9[%c0_13] : memref<1xf32, #tpu.memory_space<smem>>
      %cst_14 = arith.constant 3.000000e-01 : f32
      %20 = arith.mulf %cst_14, %19 : f32
      %21 = arith.addf %18, %20 : f32
      %c0_15 = arith.constant 0 : index
      %c0_16 = arith.constant 0 : index
      %22 = memref.load %arg7[%c0_15, %c0_16] : memref<1x1xf32, #tpu.memory_space<smem>>
      memref.store %21, %arg7[%c0_15, %c0_16] : memref<1x1xf32, #tpu.memory_space<smem>>
    } else {
    }
    return
  }
  func.func @transform_0(%arg0: i32) -> (i32, i32) {
    %c0_i32 = arith.constant 0 : i32
    %c0_i32_0 = arith.constant 0 : i32
    return %arg0, %c0_i32 : i32, i32
  }
  func.func @transform_1(%arg0: i32) -> (i32, i32) {
    %c0_i32 = arith.constant 0 : i32
    %c0_i32_0 = arith.constant 0 : i32
    return %arg0, %c0_i32 : i32, i32
  }
  func.func @transform_2(%arg0: i32) -> (i32, i32) {
    %c0_i32 = arith.constant 0 : i32
    %c0_i32_0 = arith.constant 0 : i32
    %c0_i32_1 = arith.constant 0 : i32
    return %c0_i32, %c0_i32_0 : i32, i32
  }
  func.func @transform_3(%arg0: i32) -> (i32, i32) {
    %c0_i32 = arith.constant 0 : i32
    %c0_i32_0 = arith.constant 0 : i32
    %c0_i32_1 = arith.constant 0 : i32
    return %c0_i32, %c0_i32_0 : i32, i32
  }
  func.func @transform_4(%arg0: i32) -> (i32, i32) {
    %c0_i32 = arith.constant 0 : i32
    %c0_i32_0 = arith.constant 0 : i32
    %c0_i32_1 = arith.constant 0 : i32
    return %c0_i32, %c0_i32_0 : i32, i32
  }
  func.func @transform_5(%arg0: i32) -> (i32, i32) {
    %c0_i32 = arith.constant 0 : i32
    %c0_i32_0 = arith.constant 0 : i32
    %c0_i32_1 = arith.constant 0 : i32
    return %c0_i32, %c0_i32_0 : i32, i32
  }
  func.func @transform_6(%arg0: i32) -> (i32, i32) {
    %c0_i32 = arith.constant 0 : i32
    %c0_i32_0 = arith.constant 0 : i32
    %c0_i32_1 = arith.constant 0 : i32
    return %c0_i32, %c0_i32_0 : i32, i32
  }
}

</mosaic_0001>

<llo_original>
// kernel: tpu_custom_call.1
$region0: #{tpu_custom_call.1}
  #allocation0 [shape = 'u32[]', space=smem, size = 0x4, offset = 0x4, fixed_abs, tag = 'smem constant byte address 0x4 - core index']
  #allocation1 [shape = 'u32[144,128]{1,0:T(1,128)}', space=vmem, size = 0x12000, scoped, tag = 'internal scratch']
  #allocation2 [shape = 'f32[8,1024]{1,0:T(8,128)}', space=vmem, size = 0x8000, scoped, tag = 'scratch operand']
  #allocation3 [shape = 'f32[1]{0:T(128)}', space=smem, size = 0x200, scoped, tag = 'scratch operand']
  %s0 = inlined_call_operand.hbm [shape: f32[8,1024], index: 0, kind: input, shape index: {}]
  %s1 = inlined_call_operand.hbm [shape: f32[8,1024], index: 1, kind: input, shape index: {}]
  %s2 = inlined_call_operand.hbm [shape: f32[16,256], index: 2, kind: input, shape index: {}]
  %s3 = inlined_call_operand.hbm [shape: f32[16,256], index: 3, kind: input, shape index: {}]
  %s4 = inlined_call_operand.hbm [shape: f32[32,64], index: 4, kind: input, shape index: {}]
  %s5 = inlined_call_operand.hbm [shape: f32[32,64], index: 5, kind: input, shape index: {}]
  %s6 = inlined_call_operand.hbm [shape: f32[1,1], index: 6, kind: output, shape index: {}]
  %s7 = sld [smem:[#allocation0]]
  $region66: #{tpu_custom_call.1} parent=0
    _
  %s9 = ssub.s32 1, %s7
  %s10 = scalar_select 0, %s9, %s7
  $region1: #{tpu_custom_call.1} parent=0
    #allocation4 [shape = 'u8[32768]{0}', space=vmem, size = 0x8000, scoped, tag = 'input window, operand 0, single buffered']
    #allocation5 [shape = 's32[1]{0}', space=sflag, size = 0x4, scoped, tag = 'scoped memory for tpu_custom_call.1']
    #allocation6 [shape = 's32[1]{0}', space=sflag, size = 0x4, scoped, tag = 'scoped memory for tpu_custom_call.1']
    #allocation7 [shape = 'u8[32768]{0}', space=vmem, size = 0x8000, scoped, tag = 'input window, operand 1, single buffered']
    #allocation8 [shape = 's32[1]{0}', space=sflag, size = 0x4, scoped, tag = 'scoped memory for tpu_custom_call.1']
    #allocation9 [shape = 'u8[16384]{0}', space=vmem, size = 0x4000, scoped, tag = 'input window, operand 2, single buffered']
    #allocation10 [shape = 'u8[16384]{0}', space=vmem, size = 0x4000, scoped, tag = 'input window, operand 3, single buffered']
    #allocation11 [shape = 's32[1]{0}', space=sflag, size = 0x4, scoped, tag = 'scoped memory for tpu_custom_call.1']
    #allocation12 [shape = 'u8[16384]{0}', space=vmem, size = 0x4000, scoped, tag = 'input window, operand 4, single buffered']
    #allocation13 [shape = 'u8[16384]{0}', space=vmem, size = 0x4000, scoped, tag = 'input window, operand 5, single buffered']
    #allocation14 [shape = 's32[1]{0}', space=sflag, size = 0x4, scoped, tag = 'scoped memory for tpu_custom_call.1']
    #allocation15 [shape = 'u8[512]{0}', space=smem, size = 0x200, scoped, tag = 'output window, operand 0, single buffered']
    %11 = vsyncpa [#allocation5], 0
    %12 = vsyncpa [#allocation8], 0
    %13 = vsyncpa [#allocation11], 0
    %14 = vsyncpa [#allocation14], 0
    %15 = vsyncpa [#allocation6], 0
    // Predicated region
    $region2: #{tpu_custom_call.1} parent=1 // pred_check
      _
    $region3: #{tpu_custom_call.1} parent=1 // pred_check_branch
      %17 = sbr.rel (0) target = $region5
    $region4: #{tpu_custom_call.1} parent=1 // pred_region
      %s19 = ssub.s32 1024, 1024
      %20 = vsyncadd [#allocation5], %s19
      %s22 = sshll.u32 [#allocation4], 4
      %s23 = int_to_ptr.vmem [resolvable:$true] %s22
      %25 = dma.hbm_to_vmem [thread:$0]  %s0, 1024, %s23, [#allocation5]
    $region5: #{tpu_custom_call.1} parent=1 // pred_fallthru
      _
    // Predicated region
    $region6: #{tpu_custom_call.1} parent=1 // pred_check
      _
    $region7: #{tpu_custom_call.1} parent=1 // pred_check_branch
      %27 = sbr.rel (0) target = $region9
    $region8: #{tpu_custom_call.1} parent=1 // pred_region
      %s29 = ssub.s32 1024, 1024
      %30 = vsyncadd [#allocation8], %s29
      %s32 = sshll.u32 [#allocation7], 4
      %s33 = int_to_ptr.vmem [resolvable:$true] %s32
      %35 = dma.hbm_to_vmem [thread:$0]  %s1, 1024, %s33, [#allocation8]
    $region9: #{tpu_custom_call.1} parent=1 // pred_fallthru
      _
    // Predicated region
    $region10: #{tpu_custom_call.1} parent=1 // pred_check
      _
    $region11: #{tpu_custom_call.1} parent=1 // pred_check_branch
      %37 = sbr.rel (0) target = $region13
    $region12: #{tpu_custom_call.1} parent=1 // pred_region
      %s39 = ssub.s32 512, 512
      %40 = vsyncadd [#allocation8], %s39
      %s41 = sshll.u32 [#allocation9], 4
      %s42 = int_to_ptr.vmem [resolvable:$true] %s41
      %47 = dma.hbm_to_vmem [thread:$0]  %s2, 512, %s42, [#allocation8], 256, 256, 16
    $region13: #{tpu_custom_call.1} parent=1 // pred_fallthru
      _
    // Predicated region
    $region14: #{tpu_custom_call.1} parent=1 // pred_check
      _
    $region15: #{tpu_custom_call.1} parent=1 // pred_check_branch
      %49 = sbr.rel (0) target = $region17
    $region16: #{tpu_custom_call.1} parent=1 // pred_region
      %s51 = ssub.s32 512, 512
      %52 = vsyncadd [#allocation11], %s51
      %s53 = sshll.u32 [#allocation10], 4
      %s54 = int_to_ptr.vmem [resolvable:$true] %s53
      %59 = dma.hbm_to_vmem [thread:$0]  %s3, 512, %s54, [#allocation11], 256, 256, 16
    $region17: #{tpu_custom_call.1} parent=1 // pred_fallthru
      _
    // Predicated region
    $region18: #{tpu_custom_call.1} parent=1 // pred_check
      _
    $region19: #{tpu_custom_call.1} parent=1 // pred_check_branch
      %61 = sbr.rel (0) target = $region21
    $region20: #{tpu_custom_call.1} parent=1 // pred_region
      %s63 = ssub.s32 512, 512
      %64 = vsyncadd [#allocation11], %s63
      %s65 = sshll.u32 [#allocation12], 4
      %s66 = int_to_ptr.vmem [resolvable:$true] %s65
      %71 = dma.hbm_to_vmem [thread:$0]  %s4, 512, %s66, [#allocation11], 128, 128, 8
    $region21: #{tpu_custom_call.1} parent=1 // pred_fallthru
      _
    // Predicated region
    $region22: #{tpu_custom_call.1} parent=1 // pred_check
      _
    $region23: #{tpu_custom_call.1} parent=1 // pred_check_branch
      %73 = sbr.rel (0) target = $region25
    $region24: #{tpu_custom_call.1} parent=1 // pred_region
      %s75 = ssub.s32 512, 512
      %76 = vsyncadd [#allocation14], %s75
      %s77 = sshll.u32 [#allocation13], 4
      %s78 = int_to_ptr.vmem [resolvable:$true] %s77
      %83 = dma.hbm_to_vmem [thread:$0]  %s5, 512, %s78, [#allocation14], 128, 128, 8
    $region25: #{tpu_custom_call.1} parent=1 // pred_fallthru
      _
    // Predicated region
    $region26: #{tpu_custom_call.1} parent=1 // pred_check
      _
    $region27: #{tpu_custom_call.1} parent=1 // pred_check_branch
      %85 = sbr.rel (0) target = $region29
    $region28: #{tpu_custom_call.1} parent=1 // pred_region
      %86 = dma.done [#allocation5], 1024
    $region29: #{tpu_custom_call.1} parent=1 // pred_fallthru
      _
    // Predicated region
    $region30: #{tpu_custom_call.1} parent=1 // pred_check
      _
    $region31: #{tpu_custom_call.1} parent=1 // pred_check_branch
      %88 = sbr.rel (0) target = $region33
    $region32: #{tpu_custom_call.1} parent=1 // pred_region
      %89 = dma.done [#allocation8], 1024
    $region33: #{tpu_custom_call.1} parent=1 // pred_fallthru
      _
    // Predicated region
    $region34: #{tpu_custom_call.1} parent=1 // pred_check
      _
    $region35: #{tpu_custom_call.1} parent=1 // pred_check_branch
      %91 = sbr.rel (0) target = $region37
    $region36: #{tpu_custom_call.1} parent=1 // pred_region
      %92 = dma.done [#allocation8], 512
    $region37: #{tpu_custom_call.1} parent=1 // pred_fallthru
      _
    // Predicated region
    $region38: #{tpu_custom_call.1} parent=1 // pred_check
      _
    $region39: #{tpu_custom_call.1} parent=1 // pred_check_branch
      %94 = sbr.rel (0) target = $region41
    $region40: #{tpu_custom_call.1} parent=1 // pred_region
      %95 = dma.done [#allocation11], 512
    $region41: #{tpu_custom_call.1} parent=1 // pred_fallthru
      _
    // Predicated region
    $region42: #{tpu_custom_call.1} parent=1 // pred_check
      _
    $region43: #{tpu_custom_call.1} parent=1 // pred_check_branch
      %97 = sbr.rel (0) target = $region45
    $region44: #{tpu_custom_call.1} parent=1 // pred_region
      %98 = dma.done [#allocation11], 512
    $region45: #{tpu_custom_call.1} parent=1 // pred_fallthru
      _
    // Predicated region
    $region46: #{tpu_custom_call.1} parent=1 // pred_check
      _
    $region47: #{tpu_custom_call.1} parent=1 // pred_check_branch
      %100 = sbr.rel (0) target = $region49
    $region48: #{tpu_custom_call.1} parent=1 // pred_region
      %101 = dma.done [#allocation14], 512
    $region49: #{tpu_custom_call.1} parent=1 // pred_fallthru
      _
    %p102 = scmp.eq.s32.totalorder 0, 0
    // Predicated region
    $region50: #{tpu_custom_call.1} parent=1 // pred_check
      %p103 = pneg %p102
    $region51: #{tpu_custom_call.1} parent=1 // pred_check_branch
      %105 = sbr.rel (%p103) target = $region53
    $region52: #{tpu_custom_call.1} parent=1 // pred_region
      %106 = vst [vmem:[#allocation2] sm:$0xff] 0.0
      %107 = vst [vmem:[#allocation2 + $0x8] sm:$0xff] 0.0
      %108 = vst [vmem:[#allocation2 + $0x10] sm:$0xff] 0.0
      %109 = vst [vmem:[#allocation2 + $0x18] sm:$0xff] 0.0
      %110 = vst [vmem:[#allocation2 + $0x20] sm:$0xff] 0.0
      %111 = vst [vmem:[#allocation2 + $0x28] sm:$0xff] 0.0
      %112 = vst [vmem:[#allocation2 + $0x30] sm:$0xff] 0.0
      %113 = vst [vmem:[#allocation2 + $0x38] sm:$0xff] 0.0
      %v114 = vld [vmem:[#allocation9] sm:$0xff]
      %v115 = vld [vmem:[#allocation9 + $0x8] sm:$0xff]
      %v116 = vld [vmem:[#allocation9 + $0x10] sm:$0xff]
      %v117 = vld [vmem:[#allocation9 + $0x18] sm:$0xff]
      %v118 = vld [vmem:[#allocation10] sm:$0xff]
      %v119 = vld [vmem:[#allocation10 + $0x8] sm:$0xff]
      %v120 = vld [vmem:[#allocation10 + $0x10] sm:$0xff]
      %v121 = vld [vmem:[#allocation10 + $0x18] sm:$0xff]
      %v122 = vadd.f32 %v114, %v115
      %123 = vadd.xlane.f32.xlu0 %v122
      %v124 = vpop.xlane.xlu0 %123
      %v125 = vadd.f32 %v116, %v117
      %126 = vadd.xlane.f32.xlu0 %v125
      %v127 = vpop.xlane.xlu0 %126
      %v128 = vmul.f32 %v114, %v114
      %v129 = vmul.f32 %v115, %v115
      %v130 = vmul.f32 %v116, %v116
      %v131 = vmul.f32 %v117, %v117
      %v132 = vadd.f32 %v128, %v129
      %133 = vadd.xlane.f32.xlu0 %v132
      %v134 = vpop.xlane.xlu0 %133
      %v135 = vadd.f32 %v130, %v131
      %136 = vadd.xlane.f32.xlu0 %v135
      %v137 = vpop.xlane.xlu0 %136
      %v138 = vadd.f32 %v118, %v119
      %139 = vadd.xlane.f32.xlu0 %v138
      %v140 = vpop.xlane.xlu0 %139
      %v141 = vadd.f32 %v120, %v121
      %142 = vadd.xlane.f32.xlu0 %v141
      %v143 = vpop.xlane.xlu0 %142
      %v144 = vmul.f32 %v118, %v118
      %v145 = vmul.f32 %v119, %v119
      %v146 = vmul.f32 %v120, %v120
      %v147 = vmul.f32 %v121, %v121
      %v148 = vadd.f32 %v144, %v145
      %149 = vadd.xlane.f32.xlu0 %v148
      %v150 = vpop.xlane.xlu0 %149
      %v151 = vadd.f32 %v146, %v147
      %152 = vadd.xlane.f32.xlu0 %v151
      %v153 = vpop.xlane.xlu0 %152
      %v154 = vmul.f32 %v124, 0.00390625
      %v155 = vmul.f32 %v127, 0.00390625
      %v156 = vmul.f32 %v140, 0.00390625
      %v157 = vmul.f32 %v143, 0.00390625
      %v158 = vmul.f32 %v124, %v154
      %v159 = vmul.f32 %v127, %v155
      %v160 = vsub.f32 %v134, %v158
      %v161 = vsub.f32 %v137, %v159
      %v162 = vmax.f32 %v160, 0.0
      %v163 = vmax.f32 %v161, 0.0
      %v164 = vmul.f32 %v162, 0.003921569
      %v165 = vmul.f32 %v163, 0.003921569
      %v166 = vrsqrt.pop %v164
      %v167 = vmul.f32 %v164, %v166
      %vm168 = vcmp.eq.f32.partialorder %v164, inf
      %v169 = vsel %vm168, %v164, %v167
      %vm170 = vcmp.eq.f32.partialorder %v164, 0.0
      %v171 = vand.u32 %v164, 2147483648
      %v172 = vsel %vm170, %v171, %v169
      %v173 = vrsqrt.pop %v165
      %v174 = vmul.f32 %v165, %v173
      %vm175 = vcmp.eq.f32.partialorder %v165, inf
      %v176 = vsel %vm175, %v165, %v174
      %vm177 = vcmp.eq.f32.partialorder %v165, 0.0
      %v178 = vand.u32 %v165, 2147483648
      %v179 = vsel %vm177, %v178, %v176
      %v180 = vmul.f32 %v140, %v156
      %v181 = vmul.f32 %v143, %v157
      %v182 = vsub.f32 %v150, %v180
      %v183 = vsub.f32 %v153, %v181
      %v184 = vmax.f32 %v182, 0.0
      %v185 = vmax.f32 %v183, 0.0
      %v186 = vmul.f32 %v184, 0.003921569
      %v187 = vmul.f32 %v185, 0.003921569
      %v188 = vrsqrt.pop %v186
      %v189 = vmul.f32 %v186, %v188
      %vm190 = vcmp.eq.f32.partialorder %v186, inf
      %v191 = vsel %vm190, %v186, %v189
      %vm192 = vcmp.eq.f32.partialorder %v186, 0.0
      %v193 = vand.u32 %v186, 2147483648
      %v194 = vsel %vm192, %v193, %v191
      %v195 = vrsqrt.pop %v187
      %v196 = vmul.f32 %v187, %v195
      %vm197 = vcmp.eq.f32.partialorder %v187, inf
      %v198 = vsel %vm197, %v187, %v196
      %vm199 = vcmp.eq.f32.partialorder %v187, 0.0
      %v200 = vand.u32 %v187, 2147483648
      %v201 = vsel %vm199, %v200, %v198
      %v202 = vsub.f32 %v154, %v156
      %v203 = vsub.f32 %v155, %v157
      %v204 = vsub.f32 %v172, %v194
      %v205 = vsub.f32 %v179, %v201
      %v206 = vmul.f32 %v202, %v202
      %v207 = vmul.f32 %v203, %v203
      %vm208 = vcmask 7168
      %v209 = vsel %vm208, %v206, 0.0
      %v210 = vsel %vm208, %v207, 0.0
      %v211 = vadd.f32 %v209, %v210
      %212 = vadd.xlane.f32.xlu0 %v211
      %v213 = vpop.xlane.xlu0 %212
      %v214 = vrot.slane %v213, 4
      %v215 = vadd.f32 %v213, %v214
      %v216 = vrot.slane %v215, 2
      %v217 = vadd.f32 %v215, %v216
      %v218 = vrot.slane %v217, 1
      %v219 = vadd.f32 %v217, %v218
      %s220 = vtos %v219
      %v221 = vmul.f32 %v204, %v204
      %v222 = vmul.f32 %v205, %v205
      %v223 = vsel %vm208, %v221, 0.0
      %v224 = vsel %vm208, %v222, 0.0
      %v225 = vadd.f32 %v223, %v224
      %226 = vadd.xlane.f32.xlu0 %v225
      %v227 = vpop.xlane.xlu0 %226
      %v228 = vrot.slane %v227, 4
      %v229 = vadd.f32 %v227, %v228
      %v230 = vrot.slane %v229, 2
      %v231 = vadd.f32 %v229, %v230
      %v232 = vrot.slane %v231, 1
      %v233 = vadd.f32 %v231, %v232
      %s234 = vtos %v233
      %s235 = sadd.f32 %s220, %s234
      %s236 = smul.f32 %s235, 0.0625
      %s237 = sadd.f32 %s236, 0.0
      %v238 = vld [vmem:[#allocation12] sm:$0xff]
      %v239 = vld [vmem:[#allocation12 + $0x8] sm:$0xff]
      %v240 = vld [vmem:[#allocation12 + $0x10] sm:$0xff]
      %v241 = vld [vmem:[#allocation12 + $0x18] sm:$0xff]
      %v242 = vld [vmem:[#allocation13] sm:$0xff]
      %v243 = vld [vmem:[#allocation13 + $0x8] sm:$0xff]
      %v244 = vld [vmem:[#allocation13 + $0x10] sm:$0xff]
      %v245 = vld [vmem:[#allocation13 + $0x18] sm:$0xff]
      %vm246 = vcmask 523264
      %v247 = vsel %vm246, %v238, 0.0
      %248 = vadd.xlane.f32.xlu0 %v247
      %v249 = vpop.xlane.xlu0 %248
      %v250 = vsel %vm246, %v239, 0.0
      %251 = vadd.xlane.f32.xlu0 %v250
      %v252 = vpop.xlane.xlu0 %251
      %v253 = vsel %vm246, %v240, 0.0
      %254 = vadd.xlane.f32.xlu0 %v253
      %v255 = vpop.xlane.xlu0 %254
      %v256 = vsel %vm246, %v241, 0.0
      %257 = vadd.xlane.f32.xlu0 %v256
      %v258 = vpop.xlane.xlu0 %257
      %v259 = vmul.f32 %v238, %v238
      %v260 = vmul.f32 %v239, %v239
      %v261 = vmul.f32 %v240, %v240
      %v262 = vmul.f32 %v241, %v241
      %v263 = vsel %vm246, %v259, 0.0
      %264 = vadd.xlane.f32.xlu0 %v263
      %v265 = vpop.xlane.xlu0 %264
      %v266 = vsel %vm246, %v260, 0.0
      %267 = vadd.xlane.f32.xlu0 %v266
      %v268 = vpop.xlane.xlu0 %267
      %v269 = vsel %vm246, %v261, 0.0
      %270 = vadd.xlane.f32.xlu0 %v269
      %v271 = vpop.xlane.xlu0 %270
      %v272 = vsel %vm246, %v262, 0.0
      %273 = vadd.xlane.f32.xlu0 %v272
      %v274 = vpop.xlane.xlu0 %273
      %v275 = vsel %vm246, %v242, 0.0
      %276 = vadd.xlane.f32.xlu0 %v275
      %v277 = vpop.xlane.xlu0 %276
      %v278 = vsel %vm246, %v243, 0.0
      %279 = vadd.xlane.f32.xlu0 %v278
      %v280 = vpop.xlane.xlu0 %279
      %v281 = vsel %vm246, %v244, 0.0
      %282 = vadd.xlane.f32.xlu0 %v281
      %v283 = vpop.xlane.xlu0 %282
      %v284 = vsel %vm246, %v245, 0.0
      %285 = vadd.xlane.f32.xlu0 %v284
      %v286 = vpop.xlane.xlu0 %285
      %v287 = vmul.f32 %v242, %v242
      %v288 = vmul.f32 %v243, %v243
      %v289 = vmul.f32 %v244, %v244
      %v290 = vmul.f32 %v245, %v245
      %v291 = vsel %vm246, %v287, 0.0
      %292 = vadd.xlane.f32.xlu0 %v291
      %v293 = vpop.xlane.xlu0 %292
      %v294 = vsel %vm246, %v288, 0.0
      %295 = vadd.xlane.f32.xlu0 %v294
      %v296 = vpop.xlane.xlu0 %295
      %v297 = vsel %vm246, %v289, 0.0
      %298 = vadd.xlane.f32.xlu0 %v297
      %v299 = vpop.xlane.xlu0 %298
      %v300 = vsel %vm246, %v290, 0.0
      %301 = vadd.xlane.f32.xlu0 %v300
      %v302 = vpop.xlane.xlu0 %301
      %v303 = vmul.f32 %v249, 0.015625
      %v304 = vmul.f32 %v252, 0.015625
      %v305 = vmul.f32 %v255, 0.015625
      %v306 = vmul.f32 %v258, 0.015625
      %v307 = vmul.f32 %v277, 0.015625
      %v308 = vmul.f32 %v280, 0.015625
      %v309 = vmul.f32 %v283, 0.015625
      %v310 = vmul.f32 %v286, 0.015625
      %v311 = vmul.f32 %v249, %v303
      %v312 = vmul.f32 %v252, %v304
      %v313 = vmul.f32 %v255, %v305
      %v314 = vmul.f32 %v258, %v306
      %v315 = vsub.f32 %v265, %v311
      %v316 = vsub.f32 %v268, %v312
      %v317 = vsub.f32 %v271, %v313
      %v318 = vsub.f32 %v274, %v314
      %v319 = vmax.f32 %v315, 0.0
      %v320 = vmax.f32 %v316, 0.0
      %v321 = vmax.f32 %v317, 0.0
      %v322 = vmax.f32 %v318, 0.0
      %v323 = vmul.f32 %v319, 0.015873017
      %v324 = vmul.f32 %v320, 0.015873017
      %v325 = vmul.f32 %v321, 0.015873017
      %v326 = vmul.f32 %v322, 0.015873017
      %v327 = vrsqrt.pop %v323
      %v328 = vmul.f32 %v323, %v327
      %vm329 = vcmp.eq.f32.partialorder %v323, inf
      %v330 = vsel %vm329, %v323, %v328
      %vm331 = vcmp.eq.f32.partialorder %v323, 0.0
      %v332 = vand.u32 %v323, 2147483648
      %v333 = vsel %vm331, %v332, %v330
      %v334 = vrsqrt.pop %v324
      %v335 = vmul.f32 %v324, %v334
      %vm336 = vcmp.eq.f32.partialorder %v324, inf
      %v337 = vsel %vm336, %v324, %v335
      %vm338 = vcmp.eq.f32.partialorder %v324, 0.0
      %v339 = vand.u32 %v324, 2147483648
      %v340 = vsel %vm338, %v339, %v337
      %v341 = vrsqrt.pop %v325
      %v342 = vmul.f32 %v325, %v341
      %vm343 = vcmp.eq.f32.partialorder %v325, inf
      %v344 = vsel %vm343, %v325, %v342
      %vm345 = vcmp.eq.f32.partialorder %v325, 0.0
      %v346 = vand.u32 %v325, 2147483648
      %v347 = vsel %vm345, %v346, %v344
      %v348 = vrsqrt.pop %v326
      %v349 = vmul.f32 %v326, %v348
      %vm350 = vcmp.eq.f32.partialorder %v326, inf
      %v351 = vsel %vm350, %v326, %v349
      %vm352 = vcmp.eq.f32.partialorder %v326, 0.0
      %v353 = vand.u32 %v326, 2147483648
      %v354 = vsel %vm352, %v353, %v351
      %v355 = vmul.f32 %v277, %v307
      %v356 = vmul.f32 %v280, %v308
      %v357 = vmul.f32 %v283, %v309
      %v358 = vmul.f32 %v286, %v310
      %v359 = vsub.f32 %v293, %v355
      %v360 = vsub.f32 %v296, %v356
      %v361 = vsub.f32 %v299, %v357
      %v362 = vsub.f32 %v302, %v358
      %v363 = vmax.f32 %v359, 0.0
      %v364 = vmax.f32 %v360, 0.0
      %v365 = vmax.f32 %v361, 0.0
      %v366 = vmax.f32 %v362, 0.0
      %v367 = vmul.f32 %v363, 0.015873017
      %v368 = vmul.f32 %v364, 0.015873017
      %v369 = vmul.f32 %v365, 0.015873017
      %v370 = vmul.f32 %v366, 0.015873017
      %v371 = vrsqrt.pop %v367
      %v372 = vmul.f32 %v367, %v371
      %vm373 = vcmp.eq.f32.partialorder %v367, inf
      %v374 = vsel %vm373, %v367, %v372
      %vm375 = vcmp.eq.f32.partialorder %v367, 0.0
      %v376 = vand.u32 %v367, 2147483648
      %v377 = vsel %vm375, %v376, %v374
      %v378 = vrsqrt.pop %v368
      %v379 = vmul.f32 %v368, %v378
      %vm380 = vcmp.eq.f32.partialorder %v368, inf
      %v381 = vsel %vm380, %v368, %v379
      %vm382 = vcmp.eq.f32.partialorder %v368, 0.0
      %v383 = vand.u32 %v368, 2147483648
      %v384 = vsel %vm382, %v383, %v381
      %v385 = vrsqrt.pop %v369
      %v386 = vmul.f32 %v369, %v385
      %vm387 = vcmp.eq.f32.partialorder %v369, inf
      %v388 = vsel %vm387, %v369, %v386
      %vm389 = vcmp.eq.f32.partialorder %v369, 0.0
      %v390 = vand.u32 %v369, 2147483648
      %v391 = vsel %vm389, %v390, %v388
      %v392 = vrsqrt.pop %v370
      %v393 = vmul.f32 %v370, %v392
      %vm394 = vcmp.eq.f32.partialorder %v370, inf
      %v395 = vsel %vm394, %v370, %v393
      %vm396 = vcmp.eq.f32.partialorder %v370, 0.0
      %v397 = vand.u32 %v370, 2147483648
      %v398 = vsel %vm396, %v397, %v395
      %v399 = vsub.f32 %v303, %v307
      %v400 = vsub.f32 %v304, %v308
      %v401 = vsub.f32 %v305, %v309
      %v402 = vsub.f32 %v306, %v310
      %v403 = vsub.f32 %v333, %v377
      %v404 = vsub.f32 %v340, %v384
      %v405 = vsub.f32 %v347, %v391
      %v406 = vsub.f32 %v354, %v398
      %v407 = vmul.f32 %v399, %v399
      %v408 = vmul.f32 %v400, %v400
      %v409 = vmul.f32 %v401, %v401
      %v410 = vmul.f32 %v402, %v402
      %v411 = vsel %vm208, %v407, 0.0
      %v412 = vsel %vm208, %v408, 0.0
      %v413 = vadd.f32 %v411, %v412
      %v414 = vsel %vm208, %v409, 0.0
      %v415 = vadd.f32 %v413, %v414
      %v416 = vsel %vm208, %v410, 0.0
      %v417 = vadd.f32 %v415, %v416
      %418 = vadd.xlane.f32.xlu0 %v417
      %v419 = vpop.xlane.xlu0 %418
      %v420 = vrot.slane %v419, 4
      %v421 = vadd.f32 %v419, %v420
      %v422 = vrot.slane %v421, 2
      %v423 = vadd.f32 %v421, %v422
      %v424 = vrot.slane %v423, 1
      %v425 = vadd.f32 %v423, %v424
      %s426 = vtos %v425
      %v427 = vmul.f32 %v403, %v403
      %v428 = vmul.f32 %v404, %v404
      %v429 = vmul.f32 %v405, %v405
      %v430 = vmul.f32 %v406, %v406
      %v431 = vsel %vm208, %v427, 0.0
      %v432 = vsel %vm208, %v428, 0.0
      %v433 = vadd.f32 %v431, %v432
      %v434 = vsel %vm208, %v429, 0.0
      %v435 = vadd.f32 %v433, %v434
      %v436 = vsel %vm208, %v430, 0.0
      %v437 = vadd.f32 %v435, %v436
      %438 = vadd.xlane.f32.xlu0 %v437
      %v439 = vpop.xlane.xlu0 %438
      %v440 = vrot.slane %v439, 4
      %v441 = vadd.f32 %v439, %v440
      %v442 = vrot.slane %v441, 2
      %v443 = vadd.f32 %v441, %v442
      %v444 = vrot.slane %v443, 1
      %v445 = vadd.f32 %v443, %v444
      %s446 = vtos %v445
      %s447 = sadd.f32 %s426, %s446
      %s448 = smul.f32 %s447, 0.03125
      %s449 = sadd.f32 %s237, %s448
      %s450 = scalar_lea.smem [#allocation3], 0
      %451 = sst [smem:[%s450]] %s449
    $region53: #{tpu_custom_call.1} parent=1 // pred_fallthru
      _
    %v452 = vld [vmem:[#allocation4] sm:$0xff]
    %v453 = vld [vmem:[#allocation4 + $0x8] sm:$0xff]
    %v454 = vld [vmem:[#allocation4 + $0x10] sm:$0xff]
    %v455 = vld [vmem:[#allocation4 + $0x18] sm:$0xff]
    %v456 = vld [vmem:[#allocation4 + $0x20] sm:$0xff]
    %v457 = vld [vmem:[#allocation4 + $0x28] sm:$0xff]
    %v458 = vld [vmem:[#allocation4 + $0x30] sm:$0xff]
    %v459 = vld [vmem:[#allocation4 + $0x38] sm:$0xff]
    %v460 = vld [vmem:[#allocation7] sm:$0xff]
    %v461 = vld [vmem:[#allocation7 + $0x8] sm:$0xff]
    %v462 = vld [vmem:[#allocation7 + $0x10] sm:$0xff]
    %v463 = vld [vmem:[#allocation7 + $0x18] sm:$0xff]
    %v464 = vld [vmem:[#allocation7 + $0x20] sm:$0xff]
    %v465 = vld [vmem:[#allocation7 + $0x28] sm:$0xff]
    %v466 = vld [vmem:[#allocation7 + $0x30] sm:$0xff]
    %v467 = vld [vmem:[#allocation7 + $0x38] sm:$0xff]
    %v468 = vsub.f32 %v452, %v460
    %v469 = vsub.f32 %v453, %v461
    %v470 = vsub.f32 %v454, %v462
    %v471 = vsub.f32 %v455, %v463
    %v472 = vsub.f32 %v456, %v464
    %v473 = vsub.f32 %v457, %v465
    %v474 = vsub.f32 %v458, %v466
    %v475 = vsub.f32 %v459, %v467
    %v476 = vld [vmem:[#allocation2] sm:$0xff]
    %v477 = vld [vmem:[#allocation2 + $0x8] sm:$0xff]
    %v478 = vld [vmem:[#allocation2 + $0x10] sm:$0xff]
    %v479 = vld [vmem:[#allocation2 + $0x18] sm:$0xff]
    %v480 = vld [vmem:[#allocation2 + $0x20] sm:$0xff]
    %v481 = vld [vmem:[#allocation2 + $0x28] sm:$0xff]
    %v482 = vld [vmem:[#allocation2 + $0x30] sm:$0xff]
    %v483 = vld [vmem:[#allocation2 + $0x38] sm:$0xff]
    %v484 = vmul.f32 %v468, %v468
    %v485 = vmul.f32 %v469, %v469
    %v486 = vmul.f32 %v470, %v470
    %v487 = vmul.f32 %v471, %v471
    %v488 = vmul.f32 %v472, %v472
    %v489 = vmul.f32 %v473, %v473
    %v490 = vmul.f32 %v474, %v474
    %v491 = vmul.f32 %v475, %v475
    %v492 = vadd.f32 %v476, %v484
    %v493 = vadd.f32 %v477, %v485
    %v494 = vadd.f32 %v478, %v486
    %v495 = vadd.f32 %v479, %v487
    %v496 = vadd.f32 %v480, %v488
    %v497 = vadd.f32 %v481, %v489
    %v498 = vadd.f32 %v482, %v490
    %v499 = vadd.f32 %v483, %v491
    %500 = vst [vmem:[#allocation2] sm:$0xff] %v492
    %501 = vst [vmem:[#allocation2 + $0x8] sm:$0xff] %v493
    %502 = vst [vmem:[#allocation2 + $0x10] sm:$0xff] %v494
    %503 = vst [vmem:[#allocation2 + $0x18] sm:$0xff] %v495
    %504 = vst [vmem:[#allocation2 + $0x20] sm:$0xff] %v496
    %505 = vst [vmem:[#allocation2 + $0x28] sm:$0xff] %v497
    %506 = vst [vmem:[#allocation2 + $0x30] sm:$0xff] %v498
    %507 = vst [vmem:[#allocation2 + $0x38] sm:$0xff] %v499
    // Predicated region
    $region54: #{tpu_custom_call.1} parent=1 // pred_check
      %p508 = pneg %p102
    $region55: #{tpu_custom_call.1} parent=1 // pred_check_branch
      %510 = sbr.rel (%p508) target = $region57
    $region56: #{tpu_custom_call.1} parent=1 // pred_region
      %v511 = vld [vmem:[#allocation2] sm:$0xff]
      %v512 = vld [vmem:[#allocation2 + $0x8] sm:$0xff]
      %v513 = vld [vmem:[#allocation2 + $0x10] sm:$0xff]
      %v514 = vld [vmem:[#allocation2 + $0x18] sm:$0xff]
      %v515 = vld [vmem:[#allocation2 + $0x20] sm:$0xff]
      %v516 = vld [vmem:[#allocation2 + $0x28] sm:$0xff]
      %v517 = vld [vmem:[#allocation2 + $0x30] sm:$0xff]
      %v518 = vld [vmem:[#allocation2 + $0x38] sm:$0xff]
      %v519 = vadd.f32 %v511, %v512
      %v520 = vadd.f32 %v519, %v513
      %v521 = vadd.f32 %v520, %v514
      %v522 = vadd.f32 %v521, %v515
      %v523 = vadd.f32 %v522, %v516
      %v524 = vadd.f32 %v523, %v517
      %v525 = vadd.f32 %v524, %v518
      %526 = vadd.xlane.f32.xlu0 %v525
      %v527 = vpop.xlane.xlu0 %526
      %v528 = vrot.slane %v527, 4
      %v529 = vadd.f32 %v527, %v528
      %v530 = vrot.slane %v529, 2
      %v531 = vadd.f32 %v529, %v530
      %v532 = vrot.slane %v531, 1
      %v533 = vadd.f32 %v531, %v532
      %s534 = vtos %v533
      %s535 = smul.f32 %s534, 0.00048828125
      %s536 = sld [smem:[#allocation3]]
      %s537 = smul.f32 %s536, 0.3
      %s538 = sadd.f32 %s535, %s537
      %s539 = scalar_lea.smem [#allocation15], 0
      %540 = sst [smem:[%s539]] %s538
    $region57: #{tpu_custom_call.1} parent=1 // pred_fallthru
      _
    // Predicated region
    $region58: #{tpu_custom_call.1} parent=1 // pred_check
      _
    $region59: #{tpu_custom_call.1} parent=1 // pred_check_branch
      %542 = sbr.rel (0) target = $region61
    $region60: #{tpu_custom_call.1} parent=1 // pred_region
      %s544 = ssub.s32 16, 16
      %545 = vsyncadd [#allocation6], %s544
      %548 = dma.smem_to_hbm [#allocation15], 16, %s6, [#allocation6]
    $region61: #{tpu_custom_call.1} parent=1 // pred_fallthru
      _
    // Predicated region
    $region62: #{tpu_custom_call.1} parent=1 // pred_check
      _
    $region63: #{tpu_custom_call.1} parent=1 // pred_check_branch
      %550 = sbr.rel (0) target = $region65
    $region64: #{tpu_custom_call.1} parent=1 // pred_region
      %551 = dma.done [#allocation6], 16
    $region65: #{tpu_custom_call.1} parent=1 // pred_fallthru
      _
    %552 = sfence
    %553 = vsyncpa [#allocation5], 1
    %554 = vsyncpa [#allocation8], 1
    %555 = vsyncpa [#allocation11], 1
    %556 = vsyncpa [#allocation14], 1
    %557 = vsyncpa [#allocation6], 1

</llo_original>
